<compile_context>
chip_gen: v7x
topology: tpu7x:2x2x1
jax: 0.10.0
libtpu: 0.0.40
codegen_flags: <defaults>
</compile_context>

<pallas_src>
import functools

import jax
import jax.numpy as jnp
from jax.experimental import pallas as pl
from jax.experimental.pallas import tpu as pltpu

# (fc_in, fc_out) for the 8 Linear layers.  bn0 acts on the 128-wide input;
# bn_{k+1} follows fc_k and is folded into it.
FC_DIMS = [(128, 128), (128, 64), (64, 64), (64, 64),
           (64, 32), (32, 32), (32, 16), (16, 16)]
IN_DIM = 128
OUT_DIM = 16
BN_EPS = 1e-5
L2_EPS = 1e-12          # guards the all-zero-row case (PyTorch would NaN there)
VEC_COLS = 16           # col0=bn0 scale, col1=bn0 shift, cols 2..9 = fused biases
FLOPS_PER_ROW = 2 * sum(ci * co for ci, co in FC_DIMS)

# Sublane offsets of each weight inside the packed (W_ROWS, 128) bf16 slab.
W_OFFS = []
_off = 0
for _ci, _co in FC_DIMS:
    W_OFFS.append(_off)
    _off += _co
W_ROWS = _off           # 416 (multiple of 8; every offset is 8-aligned)


def _round_up(n, m):
    return ((n + m - 1) // m) * m


def _cdiv(a, b):
    return (a + b - 1) // b


# ------------------------------- kernel ------------------------------------

def _embedding_kernel(x_ref, vec_ref, w_ref, out_ref):
    """relu(bn0(x)) -> 8x [W@h + fused-BN bias (+relu)] -> L2 norm. h is (C, TB)."""
    h = x_ref[...].astype(jnp.float32)                     # (128, TB) f32
    scale0 = vec_ref[:, 0:1]                               # (128, 1) bn0 scale
    shift0 = vec_ref[:, 1:2]                               # (128, 1) bn0 shift
    h = jnp.maximum(h * scale0 + shift0, 0.0)              # bn0 (eval) + relu0

    n_fc = len(FC_DIMS)
    for k, (c_in, c_out) in enumerate(FC_DIMS):
        off = W_OFFS[k]
        w = w_ref[off:off + c_out, 0:c_in]                 # (c_out, c_in) bf16
        b = vec_ref[0:c_out, 2 + k:3 + k]                  # (c_out, 1) f32 fused bias
        h = jnp.dot(w, h.astype(jnp.bfloat16),
                    preferred_element_type=jnp.float32) + b   # MXU, f32 acc
        if k < n_fc - 1:
            h = jnp.maximum(h, 0.0)                        # relu_{k+1}

    # L2 normalization over the feature (sublane) axis; lane-dense rsqrt.
    sq = jnp.maximum(jnp.sum(h * h, axis=0, keepdims=True), L2_EPS)
    h = h * jax.lax.rsqrt(sq)                              # (16, TB)
    out_ref[...] = h.astype(out_ref.dtype)


@functools.partial(jax.jit, static_argnames=("tb",))
def embedding_net_l2(x, vec_pack, w_slab, tb=None):
    """x: (b, 128) f32 -> (b, 16) f32 L2-normalized embedding."""
    b, d = x.shape
    assert d == IN_DIM

    # Batch-on-lane: present x to the kernel as (128, b) bf16.
    x_t = x.T.astype(jnp.bfloat16)

    if tb is None:
        if b <= 128:
            tb = _round_up(max(b, 1), 128)         # one 128-lane step, no waste
        else:
            # >= 2 grid steps (v7x dual-TC), <= 2048 lanes/step; VMEM is ample.
            tb = min(2048, max(128, _round_up(_cdiv(b, 2), 128)))
    b_pad = _round_up(b, tb)
    if b_pad != b:
        x_t = jnp.pad(x_t, ((0, 0), (0, b_pad - b)))

    grid = (b_pad // tb,)
    param_bytes = vec_pack.size * 4 + w_slab.size * 2
    cost = pl.CostEstimate(
        flops=FLOPS_PER_ROW * b_pad,
        transcendentals=b_pad,                      # one rsqrt per row
        bytes_accessed=b_pad * (IN_DIM * 2 + OUT_DIM * 4) + param_bytes,
    )

    in_specs = [
        pl.BlockSpec((IN_DIM, tb), lambda i: (0, i)),        # x: lane-tiled
        pl.BlockSpec((IN_DIM, VEC_COLS), lambda i: (0, 0)),  # packed vectors
        pl.BlockSpec((W_ROWS, IN_DIM), lambda i: (0, 0)),    # packed weight slab
    ]

    out = pl.pallas_call(
        _embedding_kernel,
        out_shape=jax.ShapeDtypeStruct((OUT_DIM, b_pad), jnp.float32),
        grid=grid,
        in_specs=in_specs,
        out_specs=pl.BlockSpec((OUT_DIM, tb), lambda i: (0, i)),
        compiler_params=pltpu.CompilerParams(
            dimension_semantics=("parallel",)),
        cost_estimate=cost,
    )(x_t, vec_pack, w_slab)

    return out[:, :b].T                             # back to (b, 16)


# ----------------------------- parameters -----------------------------------

def make_raw_params(key):
    """PyTorch-shaped parameters: 9 BatchNorm1d layers and 8 Linear layers."""
    bn_widths = [IN_DIM] + [co for _, co in FC_DIMS]         # bn0..bn8
    keys = iter(jax.random.split(key, 4 * len(bn_widths) + 2 * len(FC_DIMS)))

    bns = []
    for c in bn_widths:
        gamma = 1.0 + 0.1 * jax.random.normal(next(keys), (c,), jnp.float32)
        beta = 0.1 * jax.random.normal(next(keys), (c,), jnp.float32)
        mean = 0.1 * jax.random.normal(next(keys), (c,), jnp.float32)
        var = jnp.abs(jax.random.normal(next(keys), (c,), jnp.float32)) + 0.5
        bns.append((gamma, beta, mean, var))

    fcs = []
    for c_in, c_out in FC_DIMS:
        w = 0.1 * jax.random.normal(next(keys), (c_out, c_in), jnp.float32)
        b = 0.1 * jax.random.normal(next(keys), (c_out,), jnp.float32)
        fcs.append((w, b))                                    # PyTorch (out, in)
    return bns, fcs


def _bn_scale_shift(bn):
    gamma, beta, mean, var = bn
    scale = gamma / jnp.sqrt(var + BN_EPS)
    shift = beta - mean * scale
    return scale, shift


def prepare_kernel_params(bns, fcs):
    """Fold bn1..bn8 into fc0..fc7, pack vectors + weights, cast weights bf16."""
    scale0, shift0 = _bn_scale_shift(bns[0])
    vec_pack = jnp.zeros((IN_DIM, VEC_COLS), jnp.float32)
    vec_pack = vec_pack.at[:, 0].set(scale0)
    vec_pack = vec_pack.at[:, 1].set(shift0)

    w_slab = jnp.zeros((W_ROWS, IN_DIM), jnp.bfloat16)
    for k, ((w, b), bn) in enumerate(zip(fcs, bns[1:])):
        scale, shift = _bn_scale_shift(bn)
        c_out, c_in = w.shape
        w_fused = (w * scale[:, None]).astype(jnp.bfloat16)   # (c_out, c_in)
        b_fused = b * scale + shift                            # f32
        w_slab = w_slab.at[W_OFFS[k]:W_OFFS[k] + c_out, :c_in].set(w_fused)
        vec_pack = vec_pack.at[:c_out, 2 + k].set(b_fused)
    return vec_pack, w_slab


# ----------------------------- references -----------------------------------

def reference_f32(x, bns, fcs):
    """Unfused eval-mode f32 reference (mirrors the PyTorch module)."""
    h = x.astype(jnp.float32)
    s, t = _bn_scale_shift(bns[0])
    h = jnp.maximum(h * s + t, 0.0)
    for k, ((w, b), bn) in enumerate(zip(fcs, bns[1:])):
        h = h @ w.T + b
        s, t = _bn_scale_shift(bn)
        h = h * s + t
        if k < len(fcs) - 1:
            h = jnp.maximum(h, 0.0)
    return h / jnp.sqrt(jnp.sum(h * h, axis=1, keepdims=True))


def reference_matched(x_t_bf16, vec_pack, w_slab):
    """Same math as the kernel (transposed, fused params, bf16 MXU inputs)."""
    h = x_t_bf16.astype(jnp.float32)                       # (128, b)
    h = jnp.maximum(h * vec_pack[:, 0:1] + vec_pack[:, 1:2], 0.0)
    for k, (c_in, c_out) in enumerate(FC_DIMS):
        off = W_OFFS[k]
        w = w_slab[off:off + c_out, :c_in]
        b = vec_pack[:c_out, 2 + k:3 + k]
        h = jnp.dot(w, h.astype(jnp.bfloat16),
                    preferred_element_type=jnp.float32) + b
        if k < len(FC_DIMS) - 1:
            h = jnp.maximum(h, 0.0)
    sq = jnp.maximum(jnp.sum(h * h, axis=0, keepdims=True), L2_EPS)
    return h * jax.lax.rsqrt(sq)                           # (16, b)


if __name__ == "__main__":
    key = jax.random.PRNGKey(0)
    k_x, k_p = jax.random.split(key)

    batch = 8
    x = jax.random.normal(k_x, (batch, IN_DIM), jnp.float32)
    bns, fcs = make_raw_params(k_p)
    vec_pack, w_slab = prepare_kernel_params(bns, fcs)

    out = embedding_net_l2(x, vec_pack, w_slab)
    out = jax.block_until_ready(out)
    assert out.shape == (batch, OUT_DIM)

    # Tight check vs a reference doing the exact same (fused, bf16-MXU) math.
    ref_m = reference_matched(x.T.astype(jnp.bfloat16), vec_pack, w_slab).T
    assert jnp.allclose(out, ref_m, atol=2e-4, rtol=2e-4), "mismatch vs matched ref"

    # Looser check vs the unfused f32 eval-mode PyTorch-equivalent reference
    # (difference is only bf16 input/weight/activation rounding at the MXU).
    ref_f = reference_f32(x, bns, fcs)
    assert jnp.allclose(out, ref_f, atol=5e-2, rtol=5e-2), "mismatch vs f32 ref"

    print("KERNEL_OK")
</pallas_src>

<mosaic_0001>
module attributes {stable_mosaic.version = 11 : i64} {
  func.func @_embedding_kernel(%arg0: i32, %arg1: memref<128x128xbf16, #tpu.memory_space<vmem>>, %arg2: memref<128x16xf32, #tpu.memory_space<vmem>>, %arg3: memref<416x128xbf16, #tpu.memory_space<vmem>>, %arg4: memref<16x128xf32, #tpu.memory_space<vmem>>) attributes {dimension_semantics = [#tpu.dimension_semantics<parallel>], iteration_bounds = array<i64: 1>, scalar_prefetch = 0 : i64, scratch_operands = 0 : i64, tpu.core_type = #tpu.core_type<tc>, window_params = [{transform_indices = @transform_0, window_bounds = array<i64: 128, 128>}, {pipeline_mode = #tpu.pipeline_mode<synchronous>, transform_indices = @transform_1, window_bounds = array<i64: 128, 16>}, {pipeline_mode = #tpu.pipeline_mode<synchronous>, transform_indices = @transform_2, window_bounds = array<i64: 416, 128>}, {transform_indices = @transform_3, window_bounds = array<i64: 16, 128>}]} {
    %c0 = arith.constant 0 : index
    %c0_0 = arith.constant 0 : index
    %0 = vector.load %arg1[%c0, %c0_0] : memref<128x128xbf16, #tpu.memory_space<vmem>>, vector<128x128xbf16>
    %1 = arith.extf %0 : vector<128x128xbf16> to vector<128x128xf32>
    %c0_1 = arith.constant 0 : index
    %c0_2 = arith.constant 0 : index
    %2 = vector.load %arg2[%c0_1, %c0_2] : memref<128x16xf32, #tpu.memory_space<vmem>>, vector<128x1xf32>
    %c0_3 = arith.constant 0 : index
    %c1 = arith.constant 1 : index
    %3 = vector.load %arg2[%c0_3, %c1] : memref<128x16xf32, #tpu.memory_space<vmem>>, vector<128x1xf32>
    %4 = vector.broadcast %2 : vector<128x1xf32> to vector<128x128xf32>
    %5 = arith.mulf %1, %4 : vector<128x128xf32>
    %6 = vector.broadcast %3 : vector<128x1xf32> to vector<128x128xf32>
    %7 = arith.addf %5, %6 : vector<128x128xf32>
    %cst = arith.constant 0.000000e+00 : f32
    %8 = vector.broadcast %cst : f32 to vector<128x128xf32>
    %9 = arith.maximumf %7, %8 : vector<128x128xf32>
    %c0_4 = arith.constant 0 : index
    %c0_5 = arith.constant 0 : index
    %10 = vector.load %arg3[%c0_4, %c0_5] : memref<416x128xbf16, #tpu.memory_space<vmem>>, vector<128x128xbf16>
    %c0_6 = arith.constant 0 : index
    %c2 = arith.constant 2 : index
    %11 = vector.load %arg2[%c0_6, %c2] : memref<128x16xf32, #tpu.memory_space<vmem>>, vector<128x1xf32>
    %12 = arith.truncf %9 : vector<128x128xf32> to vector<128x128xbf16>
    %cst_7 = arith.constant dense<0.000000e+00> : vector<128x128xf32>
    %13 = tpu.matmul %10, %12, %cst_7 {dimension_numbers = #tpu.dot_dimension_numbers<[1], [0], [0], [1], [0, 0, 1, 1], [], []>} : vector<128x128xbf16>, vector<128x128xbf16>, vector<128x128xf32> -> vector<128x128xf32>
    %14 = vector.broadcast %11 : vector<128x1xf32> to vector<128x128xf32>
    %15 = arith.addf %13, %14 : vector<128x128xf32>
    %cst_8 = arith.constant 0.000000e+00 : f32
    %16 = vector.broadcast %cst_8 : f32 to vector<128x128xf32>
    %17 = arith.maximumf %15, %16 : vector<128x128xf32>
    %c128 = arith.constant 128 : index
    %c0_9 = arith.constant 0 : index
    %18 = vector.load %arg3[%c128, %c0_9] : memref<416x128xbf16, #tpu.memory_space<vmem>>, vector<64x128xbf16>
    %c0_10 = arith.constant 0 : index
    %c3 = arith.constant 3 : index
    %19 = vector.load %arg2[%c0_10, %c3] : memref<128x16xf32, #tpu.memory_space<vmem>>, vector<64x1xf32>
    %20 = arith.truncf %17 : vector<128x128xf32> to vector<128x128xbf16>
    %cst_11 = arith.constant dense<0.000000e+00> : vector<64x128xf32>
    %21 = tpu.matmul %18, %20, %cst_11 {dimension_numbers = #tpu.dot_dimension_numbers<[1], [0], [0], [1], [0, 0, 1, 1], [], []>} : vector<64x128xbf16>, vector<128x128xbf16>, vector<64x128xf32> -> vector<64x128xf32>
    %22 = vector.broadcast %19 : vector<64x1xf32> to vector<64x128xf32>
    %23 = arith.addf %21, %22 : vector<64x128xf32>
    %cst_12 = arith.constant 0.000000e+00 : f32
    %24 = vector.broadcast %cst_12 : f32 to vector<64x128xf32>
    %25 = arith.maximumf %23, %24 : vector<64x128xf32>
    %c192 = arith.constant 192 : index
    %c0_13 = arith.constant 0 : index
    %26 = vector.load %arg3[%c192, %c0_13] : memref<416x128xbf16, #tpu.memory_space<vmem>>, vector<64x64xbf16>
    %c0_14 = arith.constant 0 : index
    %c4 = arith.constant 4 : index
    %27 = vector.load %arg2[%c0_14, %c4] : memref<128x16xf32, #tpu.memory_space<vmem>>, vector<64x1xf32>
    %28 = arith.truncf %25 : vector<64x128xf32> to vector<64x128xbf16>
    %cst_15 = arith.constant dense<0.000000e+00> : vector<64x128xf32>
    %29 = tpu.matmul %26, %28, %cst_15 {dimension_numbers = #tpu.dot_dimension_numbers<[1], [0], [0], [1], [0, 0, 1, 1], [], []>} : vector<64x64xbf16>, vector<64x128xbf16>, vector<64x128xf32> -> vector<64x128xf32>
    %30 = vector.broadcast %27 : vector<64x1xf32> to vector<64x128xf32>
    %31 = arith.addf %29, %30 : vector<64x128xf32>
    %cst_16 = arith.constant 0.000000e+00 : f32
    %32 = vector.broadcast %cst_16 : f32 to vector<64x128xf32>
    %33 = arith.maximumf %31, %32 : vector<64x128xf32>
    %c256 = arith.constant 256 : index
    %c0_17 = arith.constant 0 : index
    %34 = vector.load %arg3[%c256, %c0_17] : memref<416x128xbf16, #tpu.memory_space<vmem>>, vector<64x64xbf16>
    %c0_18 = arith.constant 0 : index
    %c5 = arith.constant 5 : index
    %35 = vector.load %arg2[%c0_18, %c5] : memref<128x16xf32, #tpu.memory_space<vmem>>, vector<64x1xf32>
    %36 = arith.truncf %33 : vector<64x128xf32> to vector<64x128xbf16>
    %cst_19 = arith.constant dense<0.000000e+00> : vector<64x128xf32>
    %37 = tpu.matmul %34, %36, %cst_19 {dimension_numbers = #tpu.dot_dimension_numbers<[1], [0], [0], [1], [0, 0, 1, 1], [], []>} : vector<64x64xbf16>, vector<64x128xbf16>, vector<64x128xf32> -> vector<64x128xf32>
    %38 = vector.broadcast %35 : vector<64x1xf32> to vector<64x128xf32>
    %39 = arith.addf %37, %38 : vector<64x128xf32>
    %cst_20 = arith.constant 0.000000e+00 : f32
    %40 = vector.broadcast %cst_20 : f32 to vector<64x128xf32>
    %41 = arith.maximumf %39, %40 : vector<64x128xf32>
    %c320 = arith.constant 320 : index
    %c0_21 = arith.constant 0 : index
    %42 = vector.load %arg3[%c320, %c0_21] : memref<416x128xbf16, #tpu.memory_space<vmem>>, vector<32x64xbf16>
    %c0_22 = arith.constant 0 : index
    %c6 = arith.constant 6 : index
    %43 = vector.load %arg2[%c0_22, %c6] : memref<128x16xf32, #tpu.memory_space<vmem>>, vector<32x1xf32>
    %44 = arith.truncf %41 : vector<64x128xf32> to vector<64x128xbf16>
    %cst_23 = arith.constant dense<0.000000e+00> : vector<32x128xf32>
    %45 = tpu.matmul %42, %44, %cst_23 {dimension_numbers = #tpu.dot_dimension_numbers<[1], [0], [0], [1], [0, 0, 1, 1], [], []>} : vector<32x64xbf16>, vector<64x128xbf16>, vector<32x128xf32> -> vector<32x128xf32>
    %46 = vector.broadcast %43 : vector<32x1xf32> to vector<32x128xf32>
    %47 = arith.addf %45, %46 : vector<32x128xf32>
    %cst_24 = arith.constant 0.000000e+00 : f32
    %48 = vector.broadcast %cst_24 : f32 to vector<32x128xf32>
    %49 = arith.maximumf %47, %48 : vector<32x128xf32>
    %c352 = arith.constant 352 : index
    %c0_25 = arith.constant 0 : index
    %50 = vector.load %arg3[%c352, %c0_25] : memref<416x128xbf16, #tpu.memory_space<vmem>>, vector<32x32xbf16>
    %c0_26 = arith.constant 0 : index
    %c7 = arith.constant 7 : index
    %51 = vector.load %arg2[%c0_26, %c7] : memref<128x16xf32, #tpu.memory_space<vmem>>, vector<32x1xf32>
    %52 = arith.truncf %49 : vector<32x128xf32> to vector<32x128xbf16>
    %cst_27 = arith.constant dense<0.000000e+00> : vector<32x128xf32>
    %53 = tpu.matmul %50, %52, %cst_27 {dimension_numbers = #tpu.dot_dimension_numbers<[1], [0], [0], [1], [0, 0, 1, 1], [], []>} : vector<32x32xbf16>, vector<32x128xbf16>, vector<32x128xf32> -> vector<32x128xf32>
    %54 = vector.broadcast %51 : vector<32x1xf32> to vector<32x128xf32>
    %55 = arith.addf %53, %54 : vector<32x128xf32>
    %cst_28 = arith.constant 0.000000e+00 : f32
    %56 = vector.broadcast %cst_28 : f32 to vector<32x128xf32>
    %57 = arith.maximumf %55, %56 : vector<32x128xf32>
    %c384 = arith.constant 384 : index
    %c0_29 = arith.constant 0 : index
    %58 = vector.load %arg3[%c384, %c0_29] : memref<416x128xbf16, #tpu.memory_space<vmem>>, vector<16x32xbf16>
    %c0_30 = arith.constant 0 : index
    %c8 = arith.constant 8 : index
    %59 = vector.load %arg2[%c0_30, %c8] : memref<128x16xf32, #tpu.memory_space<vmem>>, vector<16x1xf32>
    %60 = arith.truncf %57 : vector<32x128xf32> to vector<32x128xbf16>
    %cst_31 = arith.constant dense<0.000000e+00> : vector<16x128xf32>
    %61 = tpu.matmul %58, %60, %cst_31 {dimension_numbers = #tpu.dot_dimension_numbers<[1], [0], [0], [1], [0, 0, 1, 1], [], []>} : vector<16x32xbf16>, vector<32x128xbf16>, vector<16x128xf32> -> vector<16x128xf32>
    %62 = vector.broadcast %59 : vector<16x1xf32> to vector<16x128xf32>
    %63 = arith.addf %61, %62 : vector<16x128xf32>
    %cst_32 = arith.constant 0.000000e+00 : f32
    %64 = vector.broadcast %cst_32 : f32 to vector<16x128xf32>
    %65 = arith.maximumf %63, %64 : vector<16x128xf32>
    %c400 = arith.constant 400 : index
    %c0_33 = arith.constant 0 : index
    %66 = vector.load %arg3[%c400, %c0_33] : memref<416x128xbf16, #tpu.memory_space<vmem>>, vector<16x16xbf16>
    %c0_34 = arith.constant 0 : index
    %c9 = arith.constant 9 : index
    %67 = vector.load %arg2[%c0_34, %c9] : memref<128x16xf32, #tpu.memory_space<vmem>>, vector<16x1xf32>
    %68 = arith.truncf %65 : vector<16x128xf32> to vector<16x128xbf16>
    %cst_35 = arith.constant dense<0.000000e+00> : vector<16x128xf32>
    %69 = tpu.matmul %66, %68, %cst_35 {dimension_numbers = #tpu.dot_dimension_numbers<[1], [0], [0], [1], [0, 0, 1, 1], [], []>} : vector<16x16xbf16>, vector<16x128xbf16>, vector<16x128xf32> -> vector<16x128xf32>
    %70 = vector.broadcast %67 : vector<16x1xf32> to vector<16x128xf32>
    %71 = arith.addf %69, %70 : vector<16x128xf32>
    %72 = arith.mulf %71, %71 : vector<16x128xf32>
    %cst_36 = arith.constant dense<0.000000e+00> : vector<128xf32>
    %73 = vector.multi_reduction <add>, %72, %cst_36 [0] : vector<16x128xf32> to vector<128xf32>
    %74 = vector.shape_cast %73 : vector<128xf32> to vector<1x128xf32>
    %cst_37 = arith.constant 9.99999996E-13 : f32
    %75 = vector.broadcast %cst_37 : f32 to vector<1x128xf32>
    %76 = arith.maximumf %74, %75 : vector<1x128xf32>
    %77 = math.rsqrt %76 : vector<1x128xf32>
    %78 = vector.broadcast %77 : vector<1x128xf32> to vector<16x128xf32>
    %79 = arith.mulf %71, %78 : vector<16x128xf32>
    %c0_38 = arith.constant 0 : index
    %c0_39 = arith.constant 0 : index
    %80 = vector.load %arg4[%c0_38, %c0_39] : memref<16x128xf32, #tpu.memory_space<vmem>>, vector<16x128xf32>
    tpu.vector_store %arg4[%c0_38, %c0_39], %79 {strides = array<i32>} : memref<16x128xf32, #tpu.memory_space<vmem>>, vector<16x128xf32>,
    return
  }
  func.func @transform_0(%arg0: i32) -> (i32, i32) {
    %c0_i32 = arith.constant 0 : i32
    %c0_i32_0 = arith.constant 0 : i32
    return %c0_i32, %arg0 : i32, i32
  }
  func.func @transform_1(%arg0: i32) -> (i32, i32) {
    %c0_i32 = arith.constant 0 : i32
    %c0_i32_0 = arith.constant 0 : i32
    %c0_i32_1 = arith.constant 0 : i32
    return %c0_i32, %c0_i32_0 : i32, i32
  }
  func.func @transform_2(%arg0: i32) -> (i32, i32) {
    %c0_i32 = arith.constant 0 : i32
    %c0_i32_0 = arith.constant 0 : i32
    %c0_i32_1 = arith.constant 0 : i32
    return %c0_i32, %c0_i32_0 : i32, i32
  }
  func.func @transform_3(%arg0: i32) -> (i32, i32) {
    %c0_i32 = arith.constant 0 : i32
    %c0_i32_0 = arith.constant 0 : i32
    return %c0_i32, %arg0 : i32, i32
  }
}

</mosaic_0001>

<llo_original>
// kernel: embedding_net_l2.1
$region0: #{embedding_net_l2.1}
  #allocation0 [shape = 'u32[]', space=smem, size = 0x4, offset = 0x4, fixed_abs, tag = 'smem constant byte address 0x4 - core index']
  #allocation1 [shape = 'u32[144,128]{1,0:T(1,128)}', space=vmem, size = 0x12000, scoped, tag = 'internal scratch']
  %s0 = inlined_call_operand.vmem [shape: bf16[128,128], index: 0, kind: input, shape index: {}]
  %s1 = inlined_call_operand.vmem [shape: f32[128,16], index: 1, kind: input, shape index: {}]
  %s2 = inlined_call_operand.vmem [shape: bf16[416,128], index: 2, kind: input, shape index: {}]
  %s3 = inlined_call_operand.vmem [shape: f32[16,128], index: 3, kind: output, shape index: {}]
  %s4 = sld [smem:[#allocation0]]
  $region22: #{embedding_net_l2.1} parent=0
    _
  %s6 = ssub.s32 1, %s4
  %s7 = scalar_select 0, %s6, %s4
  // Predicated region
  $region2: #{embedding_net_l2.1} parent=0 // pred_check
    _
  $region3: #{embedding_net_l2.1} parent=0 // pred_check_branch
    %9 = sbr.rel (0) target = $region5
  $region4: #{embedding_net_l2.1} parent=0 // pred_region
    _
  $region5: #{embedding_net_l2.1} parent=0 // pred_fallthru
    _
  // Predicated region
  $region6: #{embedding_net_l2.1} parent=0 // pred_check
    _
  $region7: #{embedding_net_l2.1} parent=0 // pred_check_branch
    %11 = sbr.rel (0) target = $region9
  $region8: #{embedding_net_l2.1} parent=0 // pred_region
    _
  $region9: #{embedding_net_l2.1} parent=0 // pred_fallthru
    _
  // Predicated region
  $region10: #{embedding_net_l2.1} parent=0 // pred_check
    _
  $region11: #{embedding_net_l2.1} parent=0 // pred_check_branch
    %13 = sbr.rel (0) target = $region13
  $region12: #{embedding_net_l2.1} parent=0 // pred_region
    _
  $region13: #{embedding_net_l2.1} parent=0 // pred_fallthru
    _
  %v15 = vld [vmem:[%s0] sm:$0xf]
  %v16 = vld [vmem:[%s0 + $0x4] sm:$0xf]
  %v17 = vld [vmem:[%s0 + $0x8] sm:$0xf]
  %v18 = vld [vmem:[%s0 + $0xc] sm:$0xf]
  %v19 = vld [vmem:[%s0 + $0x10] sm:$0xf]
  %v20 = vld [vmem:[%s0 + $0x14] sm:$0xf]
  %v21 = vld [vmem:[%s0 + $0x18] sm:$0xf]
  %v22 = vld [vmem:[%s0 + $0x1c] sm:$0xf]
  %v23 = vld [vmem:[%s0 + $0x20] sm:$0xf]
  %v24 = vld [vmem:[%s0 + $0x24] sm:$0xf]
  %v25 = vld [vmem:[%s0 + $0x28] sm:$0xf]
  %v26 = vld [vmem:[%s0 + $0x2c] sm:$0xf]
  %v27 = vld [vmem:[%s0 + $0x30] sm:$0xf]
  %v28 = vld [vmem:[%s0 + $0x34] sm:$0xf]
  %v29 = vld [vmem:[%s0 + $0x38] sm:$0xf]
  %v30 = vld [vmem:[%s0 + $0x3c] sm:$0xf]
  %v31 = vunpack.c.l.bf16 %v15
  %v32 = vunpack.c.l.bf16 %v16
  %v33 = vunpack.c.l.bf16 %v17
  %v34 = vunpack.c.l.bf16 %v18
  %v35 = vunpack.c.l.bf16 %v19
  %v36 = vunpack.c.l.bf16 %v20
  %v37 = vunpack.c.l.bf16 %v21
  %v38 = vunpack.c.l.bf16 %v22
  %v39 = vunpack.c.l.bf16 %v23
  %v40 = vunpack.c.l.bf16 %v24
  %v41 = vunpack.c.l.bf16 %v25
  %v42 = vunpack.c.l.bf16 %v26
  %v43 = vunpack.c.l.bf16 %v27
  %v44 = vunpack.c.l.bf16 %v28
  %v45 = vunpack.c.l.bf16 %v29
  %v46 = vunpack.c.l.bf16 %v30
  %v47 = vld [vmem:[%s1] sm:$0xff]
  %v48 = vld [vmem:[%s1 + $0x8] sm:$0xff]
  %v49 = vld [vmem:[%s1 + $0x10] sm:$0xff]
  %v50 = vld [vmem:[%s1 + $0x18] sm:$0xff]
  %v51 = vld [vmem:[%s1 + $0x20] sm:$0xff]
  %v52 = vld [vmem:[%s1 + $0x28] sm:$0xff]
  %v53 = vld [vmem:[%s1 + $0x30] sm:$0xff]
  %v54 = vld [vmem:[%s1 + $0x38] sm:$0xff]
  %v55 = vld [vmem:[%s1 + $0x40] sm:$0xff]
  %v56 = vld [vmem:[%s1 + $0x48] sm:$0xff]
  %v57 = vld [vmem:[%s1 + $0x50] sm:$0xff]
  %v58 = vld [vmem:[%s1 + $0x58] sm:$0xff]
  %v59 = vld [vmem:[%s1 + $0x60] sm:$0xff]
  %v60 = vld [vmem:[%s1 + $0x68] sm:$0xff]
  %v61 = vld [vmem:[%s1 + $0x70] sm:$0xff]
  %v62 = vld [vmem:[%s1 + $0x78] sm:$0xff]
  %64 = vset.pattern.permute.xlu0 0
  %65 = vperm.xlu0 %64, %v47
  %v66 = vpop.permute.xlu0 %65
  %69 = vset.pattern.permute.xlu0 0
  %70 = vperm.xlu0 %69, %v48
  %v71 = vpop.permute.xlu0 %70
  %74 = vset.pattern.permute.xlu0 0
  %75 = vperm.xlu0 %74, %v49
  %v76 = vpop.permute.xlu0 %75
  %79 = vset.pattern.permute.xlu0 0
  %80 = vperm.xlu0 %79, %v50
  %v81 = vpop.permute.xlu0 %80
  %84 = vset.pattern.permute.xlu0 0
  %85 = vperm.xlu0 %84, %v51
  %v86 = vpop.permute.xlu0 %85
  %89 = vset.pattern.permute.xlu0 0
  %90 = vperm.xlu0 %89, %v52
  %v91 = vpop.permute.xlu0 %90
  %94 = vset.pattern.permute.xlu0 0
  %95 = vperm.xlu0 %94, %v53
  %v96 = vpop.permute.xlu0 %95
  %99 = vset.pattern.permute.xlu0 0
  %100 = vperm.xlu0 %99, %v54
  %v101 = vpop.permute.xlu0 %100
  %104 = vset.pattern.permute.xlu0 0
  %105 = vperm.xlu0 %104, %v55
  %v106 = vpop.permute.xlu0 %105
  %109 = vset.pattern.permute.xlu0 0
  %110 = vperm.xlu0 %109, %v56
  %v111 = vpop.permute.xlu0 %110
  %114 = vset.pattern.permute.xlu0 0
  %115 = vperm.xlu0 %114, %v57
  %v116 = vpop.permute.xlu0 %115
  %119 = vset.pattern.permute.xlu0 0
  %120 = vperm.xlu0 %119, %v58
  %v121 = vpop.permute.xlu0 %120
  %124 = vset.pattern.permute.xlu0 0
  %125 = vperm.xlu0 %124, %v59
  %v126 = vpop.permute.xlu0 %125
  %129 = vset.pattern.permute.xlu0 0
  %130 = vperm.xlu0 %129, %v60
  %v131 = vpop.permute.xlu0 %130
  %134 = vset.pattern.permute.xlu0 0
  %135 = vperm.xlu0 %134, %v61
  %v136 = vpop.permute.xlu0 %135
  %139 = vset.pattern.permute.xlu0 0
  %140 = vperm.xlu0 %139, %v62
  %v141 = vpop.permute.xlu0 %140
  %v143 = vmul.f32 %v31, %v66
  %v144 = vmul.f32 %v32, %v71
  %v145 = vmul.f32 %v33, %v76
  %v146 = vmul.f32 %v34, %v81
  %v147 = vmul.f32 %v35, %v86
  %v148 = vmul.f32 %v36, %v91
  %v149 = vmul.f32 %v37, %v96
  %v150 = vmul.f32 %v38, %v101
  %v151 = vmul.f32 %v39, %v106
  %v152 = vmul.f32 %v40, %v111
  %v153 = vmul.f32 %v41, %v116
  %v154 = vmul.f32 %v42, %v121
  %v155 = vmul.f32 %v43, %v126
  %v156 = vmul.f32 %v44, %v131
  %v157 = vmul.f32 %v45, %v136
  %v158 = vmul.f32 %v46, %v141
  %159 = vset.pattern.permute.xlu0 1
  %160 = vperm.xlu0 %159, %v47
  %v161 = vpop.permute.xlu0 %160
  %163 = vset.pattern.permute.xlu0 1
  %164 = vperm.xlu0 %163, %v48
  %v165 = vpop.permute.xlu0 %164
  %167 = vset.pattern.permute.xlu0 1
  %168 = vperm.xlu0 %167, %v49
  %v169 = vpop.permute.xlu0 %168
  %171 = vset.pattern.permute.xlu0 1
  %172 = vperm.xlu0 %171, %v50
  %v173 = vpop.permute.xlu0 %172
  %175 = vset.pattern.permute.xlu0 1
  %176 = vperm.xlu0 %175, %v51
  %v177 = vpop.permute.xlu0 %176
  %179 = vset.pattern.permute.xlu0 1
  %180 = vperm.xlu0 %179, %v52
  %v181 = vpop.permute.xlu0 %180
  %183 = vset.pattern.permute.xlu0 1
  %184 = vperm.xlu0 %183, %v53
  %v185 = vpop.permute.xlu0 %184
  %187 = vset.pattern.permute.xlu0 1
  %188 = vperm.xlu0 %187, %v54
  %v189 = vpop.permute.xlu0 %188
  %191 = vset.pattern.permute.xlu0 1
  %192 = vperm.xlu0 %191, %v55
  %v193 = vpop.permute.xlu0 %192
  %195 = vset.pattern.permute.xlu0 1
  %196 = vperm.xlu0 %195, %v56
  %v197 = vpop.permute.xlu0 %196
  %199 = vset.pattern.permute.xlu0 1
  %200 = vperm.xlu0 %199, %v57
  %v201 = vpop.permute.xlu0 %200
  %203 = vset.pattern.permute.xlu0 1
  %204 = vperm.xlu0 %203, %v58
  %v205 = vpop.permute.xlu0 %204
  %207 = vset.pattern.permute.xlu0 1
  %208 = vperm.xlu0 %207, %v59
  %v209 = vpop.permute.xlu0 %208
  %211 = vset.pattern.permute.xlu0 1
  %212 = vperm.xlu0 %211, %v60
  %v213 = vpop.permute.xlu0 %212
  %215 = vset.pattern.permute.xlu0 1
  %216 = vperm.xlu0 %215, %v61
  %v217 = vpop.permute.xlu0 %216
  %219 = vset.pattern.permute.xlu0 1
  %220 = vperm.xlu0 %219, %v62
  %v221 = vpop.permute.xlu0 %220
  %v223 = vadd.f32 %v143, %v161
  %v224 = vadd.f32 %v144, %v165
  %v225 = vadd.f32 %v145, %v169
  %v226 = vadd.f32 %v146, %v173
  %v227 = vadd.f32 %v147, %v177
  %v228 = vadd.f32 %v148, %v181
  %v229 = vadd.f32 %v149, %v185
  %v230 = vadd.f32 %v150, %v189
  %v231 = vadd.f32 %v151, %v193
  %v232 = vadd.f32 %v152, %v197
  %v233 = vadd.f32 %v153, %v201
  %v234 = vadd.f32 %v154, %v205
  %v235 = vadd.f32 %v155, %v209
  %v236 = vadd.f32 %v156, %v213
  %v237 = vadd.f32 %v157, %v217
  %v238 = vadd.f32 %v158, %v221
  %v239 = vmax.f32 %v223, 0.0
  %v240 = vmax.f32 %v224, 0.0
  %v241 = vmax.f32 %v225, 0.0
  %v242 = vmax.f32 %v226, 0.0
  %v243 = vmax.f32 %v227, 0.0
  %v244 = vmax.f32 %v228, 0.0
  %v245 = vmax.f32 %v229, 0.0
  %v246 = vmax.f32 %v230, 0.0
  %v247 = vmax.f32 %v231, 0.0
  %v248 = vmax.f32 %v232, 0.0
  %v249 = vmax.f32 %v233, 0.0
  %v250 = vmax.f32 %v234, 0.0
  %v251 = vmax.f32 %v235, 0.0
  %v252 = vmax.f32 %v236, 0.0
  %v253 = vmax.f32 %v237, 0.0
  %v254 = vmax.f32 %v238, 0.0
  %v255 = vld [vmem:[%s2] sm:$0xf]
  %v256 = vld [vmem:[%s2 + $0x4] sm:$0xf]
  %v257 = vld [vmem:[%s2 + $0x8] sm:$0xf]
  %v258 = vld [vmem:[%s2 + $0xc] sm:$0xf]
  %v259 = vld [vmem:[%s2 + $0x10] sm:$0xf]
  %v260 = vld [vmem:[%s2 + $0x14] sm:$0xf]
  %v261 = vld [vmem:[%s2 + $0x18] sm:$0xf]
  %v262 = vld [vmem:[%s2 + $0x1c] sm:$0xf]
  %v263 = vld [vmem:[%s2 + $0x20] sm:$0xf]
  %v264 = vld [vmem:[%s2 + $0x24] sm:$0xf]
  %v265 = vld [vmem:[%s2 + $0x28] sm:$0xf]
  %v266 = vld [vmem:[%s2 + $0x2c] sm:$0xf]
  %v267 = vld [vmem:[%s2 + $0x30] sm:$0xf]
  %v268 = vld [vmem:[%s2 + $0x34] sm:$0xf]
  %v269 = vld [vmem:[%s2 + $0x38] sm:$0xf]
  %v270 = vld [vmem:[%s2 + $0x3c] sm:$0xf]
  %v271 = vpack.c.bf16 %v240, %v239
  %v272 = vpack.c.bf16 %v242, %v241
  %v273 = vpack.c.bf16 %v244, %v243
  %v274 = vpack.c.bf16 %v246, %v245
  %v275 = vpack.c.bf16 %v248, %v247
  %v276 = vpack.c.bf16 %v250, %v249
  %v277 = vpack.c.bf16 %v252, %v251
  %v278 = vpack.c.bf16 %v254, %v253
  %279 = vset.pattern.permute.xlu0 2
  %280 = vperm.xlu0 %279, %v47
  %v281 = vpop.permute.xlu0 %280
  %283 = vset.pattern.permute.xlu0 2
  %284 = vperm.xlu0 %283, %v48
  %v285 = vpop.permute.xlu0 %284
  %287 = vset.pattern.permute.xlu0 2
  %288 = vperm.xlu0 %287, %v49
  %v289 = vpop.permute.xlu0 %288
  %291 = vset.pattern.permute.xlu0 2
  %292 = vperm.xlu0 %291, %v50
  %v293 = vpop.permute.xlu0 %292
  %295 = vset.pattern.permute.xlu0 2
  %296 = vperm.xlu0 %295, %v51
  %v297 = vpop.permute.xlu0 %296
  %299 = vset.pattern.permute.xlu0 2
  %300 = vperm.xlu0 %299, %v52
  %v301 = vpop.permute.xlu0 %300
  %303 = vset.pattern.permute.xlu0 2
  %304 = vperm.xlu0 %303, %v53
  %v305 = vpop.permute.xlu0 %304
  %307 = vset.pattern.permute.xlu0 2
  %308 = vperm.xlu0 %307, %v54
  %v309 = vpop.permute.xlu0 %308
  %311 = vset.pattern.permute.xlu0 2
  %312 = vperm.xlu0 %311, %v55
  %v313 = vpop.permute.xlu0 %312
  %315 = vset.pattern.permute.xlu0 2
  %316 = vperm.xlu0 %315, %v56
  %v317 = vpop.permute.xlu0 %316
  %319 = vset.pattern.permute.xlu0 2
  %320 = vperm.xlu0 %319, %v57
  %v321 = vpop.permute.xlu0 %320
  %323 = vset.pattern.permute.xlu0 2
  %324 = vperm.xlu0 %323, %v58
  %v325 = vpop.permute.xlu0 %324
  %327 = vset.pattern.permute.xlu0 2
  %328 = vperm.xlu0 %327, %v59
  %v329 = vpop.permute.xlu0 %328
  %331 = vset.pattern.permute.xlu0 2
  %332 = vperm.xlu0 %331, %v60
  %v333 = vpop.permute.xlu0 %332
  %335 = vset.pattern.permute.xlu0 2
  %336 = vperm.xlu0 %335, %v61
  %v337 = vpop.permute.xlu0 %336
  %339 = vset.pattern.permute.xlu0 2
  %340 = vperm.xlu0 %339, %v62
  %v341 = vpop.permute.xlu0 %340
  %v359 = vunpack.c.l.b16 %v255
  %v360 = vunpack.c.l.b16 %v256
  %v361 = vunpack.c.l.b16 %v257
  %v362 = vunpack.c.l.b16 %v258
  %v363 = vunpack.c.l.b16 %v259
  %v364 = vunpack.c.l.b16 %v260
  %v365 = vunpack.c.l.b16 %v261
  %v366 = vunpack.c.l.b16 %v262
  %v367 = vunpack.c.l.b16 %v263
  %v368 = vunpack.c.l.b16 %v264
  %v369 = vunpack.c.l.b16 %v265
  %v370 = vunpack.c.l.b16 %v266
  %v371 = vunpack.c.l.b16 %v267
  %v372 = vunpack.c.l.b16 %v268
  %v373 = vunpack.c.l.b16 %v269
  %v374 = vunpack.c.l.b16 %v270
  %v375 = vpack.c.b16 %v360, %v359
  %v376 = vpack.c.b16 %v362, %v361
  %v377 = vpack.c.b16 %v364, %v363
  %v378 = vpack.c.b16 %v366, %v365
  %v379 = vpack.c.b16 %v368, %v367
  %v380 = vpack.c.b16 %v370, %v369
  %v381 = vpack.c.b16 %v372, %v371
  %v382 = vpack.c.b16 %v374, %v373
  %391 = vmatprep.subr.bf16.mxu0 0
  %392 = vmatpush1.bf16.msra.mxu0 %v271
  %393 = vmatprep.subr.bf16.mxu0 0
  %394 = vmatpush1.bf16.msra.mxu0 %v272
  %395 = vmatprep.subr.bf16.mxu0 0
  %396 = vmatpush1.bf16.msra.mxu0 %v273
  %397 = vmatprep.subr.bf16.mxu0 0
  %398 = vmatpush1.bf16.msra.mxu0 %v274
  %399 = vmatprep.subr.bf16.mxu0 0
  %400 = vmatpush1.bf16.msra.mxu0 %v275
  %401 = vmatprep.subr.bf16.mxu0 0
  %402 = vmatpush1.bf16.msra.mxu0 %v276
  %403 = vmatprep.subr.bf16.mxu0 0
  %404 = vmatpush1.bf16.msra.mxu0 %v277
  %405 = vmatprep.subr.bf16.mxu0 0
  %406 = vmatpush1.bf16.msra.mxu0 %v278
  %407 = vmatprep.subr.bf16.mxu0 0
  %408 = vmatpush1.bf16.msra.mxu0 0
  %409 = vmatprep.subr.bf16.mxu0 0
  %410 = vmatpush1.bf16.msra.mxu0 0
  %411 = vmatprep.subr.bf16.mxu0 0
  %412 = vmatpush1.bf16.msra.mxu0 0
  %413 = vmatprep.subr.bf16.mxu0 0
  %414 = vmatpush1.bf16.msra.mxu0 0
  %415 = vmatprep.subr.bf16.mxu0 0
  %416 = vmatpush1.bf16.msra.mxu0 0
  %417 = vmatprep.subr.bf16.mxu0 0
  %418 = vmatpush1.bf16.msra.mxu0 0
  %419 = vmatprep.subr.bf16.mxu0 0
  %420 = vmatpush1.bf16.msra.mxu0 0
  %421 = vmatprep.subr.bf16.mxu0 0
  %422 = vmatpush1.bf16.msra.mxu0 0
  %423 = vmatprep.mubr.bf16.mxu0 0
  %424 = vmatmul.mubr.bf16.gmra.mrb[0].mxu0 %v375
  %v425 = vpop.f32.mrb[0].mxu0
  %v426 = vadd.f32 %v281, %v425
  %v427 = vpop.f32.mrb[0].mxu0
  %v428 = vpop.f32.mrb[0].mxu0
  %v429 = vadd.f32 %v285, %v428
  %v430 = vpop.f32.mrb[0].mxu0
  %431 = vmatprep.mubr.bf16.mxu0 0
  %432 = vmatmul.mubr.bf16.gmra.mrb[0].mxu0 %v376
  %v433 = vpop.f32.mrb[0].mxu0
  %v434 = vadd.f32 %v289, %v433
  %v435 = vpop.f32.mrb[0].mxu0
  %v436 = vpop.f32.mrb[0].mxu0
  %v437 = vadd.f32 %v293, %v436
  %v438 = vpop.f32.mrb[0].mxu0
  %439 = vmatprep.mubr.bf16.mxu0 0
  %440 = vmatmul.mubr.bf16.gmra.mrb[0].mxu0 %v377
  %v441 = vpop.f32.mrb[0].mxu0
  %v442 = vadd.f32 %v297, %v441
  %v443 = vpop.f32.mrb[0].mxu0
  %v444 = vpop.f32.mrb[0].mxu0
  %v445 = vadd.f32 %v301, %v444
  %v446 = vpop.f32.mrb[0].mxu0
  %447 = vmatprep.mubr.bf16.mxu0 0
  %448 = vmatmul.mubr.bf16.gmra.mrb[0].mxu0 %v378
  %v449 = vpop.f32.mrb[0].mxu0
  %v450 = vadd.f32 %v305, %v449
  %v451 = vpop.f32.mrb[0].mxu0
  %v452 = vpop.f32.mrb[0].mxu0
  %v453 = vadd.f32 %v309, %v452
  %v454 = vpop.f32.mrb[0].mxu0
  %455 = vmatprep.mubr.bf16.mxu0 0
  %456 = vmatmul.mubr.bf16.gmra.mrb[0].mxu0 %v379
  %v457 = vpop.f32.mrb[0].mxu0
  %v458 = vadd.f32 %v313, %v457
  %v459 = vpop.f32.mrb[0].mxu0
  %v460 = vpop.f32.mrb[0].mxu0
  %v461 = vadd.f32 %v317, %v460
  %v462 = vpop.f32.mrb[0].mxu0
  %463 = vmatprep.mubr.bf16.mxu0 0
  %464 = vmatmul.mubr.bf16.gmra.mrb[0].mxu0 %v380
  %v465 = vpop.f32.mrb[0].mxu0
  %v466 = vadd.f32 %v321, %v465
  %v467 = vpop.f32.mrb[0].mxu0
  %v468 = vpop.f32.mrb[0].mxu0
  %v469 = vadd.f32 %v325, %v468
  %v470 = vpop.f32.mrb[0].mxu0
  %471 = vmatprep.mubr.bf16.mxu0 0
  %472 = vmatmul.mubr.bf16.gmra.mrb[0].mxu0 %v381
  %v473 = vpop.f32.mrb[0].mxu0
  %v474 = vadd.f32 %v329, %v473
  %v475 = vpop.f32.mrb[0].mxu0
  %v476 = vpop.f32.mrb[0].mxu0
  %v477 = vadd.f32 %v333, %v476
  %v478 = vpop.f32.mrb[0].mxu0
  %479 = vmatprep.mubr.bf16.mxu0 0
  %480 = vmatmul.mubr.bf16.gmra.mrb[0].mxu0 %v382
  %v481 = vpop.f32.mrb[0].mxu0
  %v482 = vadd.f32 %v337, %v481
  %v483 = vpop.f32.mrb[0].mxu0
  %v484 = vpop.f32.mrb[0].mxu0
  %v485 = vadd.f32 %v341, %v484
  %v486 = vpop.f32.mrb[0].mxu0
  %487 = vdwg.mxu0
  %v488 = vmax.f32 %v426, 0.0
  %v489 = vmax.f32 %v429, 0.0
  %v490 = vmax.f32 %v434, 0.0
  %v491 = vmax.f32 %v437, 0.0
  %v492 = vmax.f32 %v442, 0.0
  %v493 = vmax.f32 %v445, 0.0
  %v494 = vmax.f32 %v450, 0.0
  %v495 = vmax.f32 %v453, 0.0
  %v496 = vmax.f32 %v458, 0.0
  %v497 = vmax.f32 %v461, 0.0
  %v498 = vmax.f32 %v466, 0.0
  %v499 = vmax.f32 %v469, 0.0
  %v500 = vmax.f32 %v474, 0.0
  %v501 = vmax.f32 %v477, 0.0
  %v502 = vmax.f32 %v482, 0.0
  %v503 = vmax.f32 %v485, 0.0
  %v504 = vld [vmem:[%s2 + $0x40] sm:$0xf]
  %v505 = vld [vmem:[%s2 + $0x44] sm:$0xf]
  %v506 = vld [vmem:[%s2 + $0x48] sm:$0xf]
  %v507 = vld [vmem:[%s2 + $0x4c] sm:$0xf]
  %v508 = vld [vmem:[%s2 + $0x50] sm:$0xf]
  %v509 = vld [vmem:[%s2 + $0x54] sm:$0xf]
  %v510 = vld [vmem:[%s2 + $0x58] sm:$0xf]
  %v511 = vld [vmem:[%s2 + $0x5c] sm:$0xf]
  %v512 = vld [vmem:[%s1] sm:$0xff]
  %v513 = vld [vmem:[%s1 + $0x8] sm:$0xff]
  %v514 = vld [vmem:[%s1 + $0x10] sm:$0xff]
  %v515 = vld [vmem:[%s1 + $0x18] sm:$0xff]
  %v516 = vld [vmem:[%s1 + $0x20] sm:$0xff]
  %v517 = vld [vmem:[%s1 + $0x28] sm:$0xff]
  %v518 = vld [vmem:[%s1 + $0x30] sm:$0xff]
  %v519 = vld [vmem:[%s1 + $0x38] sm:$0xff]
  %v520 = vpack.c.bf16 %v489, %v488
  %v521 = vpack.c.bf16 %v491, %v490
  %v522 = vpack.c.bf16 %v493, %v492
  %v523 = vpack.c.bf16 %v495, %v494
  %v524 = vpack.c.bf16 %v497, %v496
  %v525 = vpack.c.bf16 %v499, %v498
  %v526 = vpack.c.bf16 %v501, %v500
  %v527 = vpack.c.bf16 %v503, %v502
  %529 = vset.pattern.permute.xlu0 3
  %530 = vperm.xlu0 %529, %v512
  %v531 = vpop.permute.xlu0 %530
  %534 = vset.pattern.permute.xlu0 3
  %535 = vperm.xlu0 %534, %v513
  %v536 = vpop.permute.xlu0 %535
  %539 = vset.pattern.permute.xlu0 3
  %540 = vperm.xlu0 %539, %v514
  %v541 = vpop.permute.xlu0 %540
  %544 = vset.pattern.permute.xlu0 3
  %545 = vperm.xlu0 %544, %v515
  %v546 = vpop.permute.xlu0 %545
  %549 = vset.pattern.permute.xlu0 3
  %550 = vperm.xlu0 %549, %v516
  %v551 = vpop.permute.xlu0 %550
  %554 = vset.pattern.permute.xlu0 3
  %555 = vperm.xlu0 %554, %v517
  %v556 = vpop.permute.xlu0 %555
  %559 = vset.pattern.permute.xlu0 3
  %560 = vperm.xlu0 %559, %v518
  %v561 = vpop.permute.xlu0 %560
  %564 = vset.pattern.permute.xlu0 3
  %565 = vperm.xlu0 %564, %v519
  %v566 = vpop.permute.xlu0 %565
  %v576 = vunpack.c.l.b16 %v504
  %v577 = vunpack.c.l.b16 %v505
  %v578 = vunpack.c.l.b16 %v506
  %v579 = vunpack.c.l.b16 %v507
  %v580 = vunpack.c.l.b16 %v508
  %v581 = vunpack.c.l.b16 %v509
  %v582 = vunpack.c.l.b16 %v510
  %v583 = vunpack.c.l.b16 %v511
  %v584 = vpack.c.b16 %v577, %v576
  %v585 = vpack.c.b16 %v579, %v578
  %v586 = vpack.c.b16 %v581, %v580
  %v587 = vpack.c.b16 %v583, %v582
  %592 = vmatprep.subr.bf16.mxu0 0
  %593 = vmatpush1.bf16.msra.mxu0 %v520
  %594 = vmatprep.subr.bf16.mxu0 0
  %595 = vmatpush1.bf16.msra.mxu0 %v521
  %596 = vmatprep.subr.bf16.mxu0 0
  %597 = vmatpush1.bf16.msra.mxu0 %v522
  %598 = vmatprep.subr.bf16.mxu0 0
  %599 = vmatpush1.bf16.msra.mxu0 %v523
  %600 = vmatprep.subr.bf16.mxu0 0
  %601 = vmatpush1.bf16.msra.mxu0 %v524
  %602 = vmatprep.subr.bf16.mxu0 0
  %603 = vmatpush1.bf16.msra.mxu0 %v525
  %604 = vmatprep.subr.bf16.mxu0 0
  %605 = vmatpush1.bf16.msra.mxu0 %v526
  %606 = vmatprep.subr.bf16.mxu0 0
  %607 = vmatpush1.bf16.msra.mxu0 %v527
  %608 = vmatprep.subr.bf16.mxu0 0
  %609 = vmatpush1.bf16.msra.mxu0 0
  %610 = vmatprep.subr.bf16.mxu0 0
  %611 = vmatpush1.bf16.msra.mxu0 0
  %612 = vmatprep.subr.bf16.mxu0 0
  %613 = vmatpush1.bf16.msra.mxu0 0
  %614 = vmatprep.subr.bf16.mxu0 0
  %615 = vmatpush1.bf16.msra.mxu0 0
  %616 = vmatprep.subr.bf16.mxu0 0
  %617 = vmatpush1.bf16.msra.mxu0 0
  %618 = vmatprep.subr.bf16.mxu0 0
  %619 = vmatpush1.bf16.msra.mxu0 0
  %620 = vmatprep.subr.bf16.mxu0 0
  %621 = vmatpush1.bf16.msra.mxu0 0
  %622 = vmatprep.subr.bf16.mxu0 0
  %623 = vmatpush1.bf16.msra.mxu0 0
  %624 = vmatprep.mubr.bf16.mxu0 0
  %625 = vmatmul.mubr.bf16.gmra.mrb[0].mxu0 %v584
  %v626 = vpop.f32.mrb[0].mxu0
  %v627 = vadd.f32 %v531, %v626
  %v628 = vpop.f32.mrb[0].mxu0
  %v629 = vpop.f32.mrb[0].mxu0
  %v630 = vadd.f32 %v536, %v629
  %v631 = vpop.f32.mrb[0].mxu0
  %632 = vmatprep.mubr.bf16.mxu0 0
  %633 = vmatmul.mubr.bf16.gmra.mrb[0].mxu0 %v585
  %v634 = vpop.f32.mrb[0].mxu0
  %v635 = vadd.f32 %v541, %v634
  %v636 = vpop.f32.mrb[0].mxu0
  %v637 = vpop.f32.mrb[0].mxu0
  %v638 = vadd.f32 %v546, %v637
  %v639 = vpop.f32.mrb[0].mxu0
  %640 = vmatprep.mubr.bf16.mxu0 0
  %641 = vmatmul.mubr.bf16.gmra.mrb[0].mxu0 %v586
  %v642 = vpop.f32.mrb[0].mxu0
  %v643 = vadd.f32 %v551, %v642
  %v644 = vpop.f32.mrb[0].mxu0
  %v645 = vpop.f32.mrb[0].mxu0
  %v646 = vadd.f32 %v556, %v645
  %v647 = vpop.f32.mrb[0].mxu0
  %648 = vmatprep.mubr.bf16.mxu0 0
  %649 = vmatmul.mubr.bf16.gmra.mrb[0].mxu0 %v587
  %v650 = vpop.f32.mrb[0].mxu0
  %v651 = vadd.f32 %v561, %v650
  %v652 = vpop.f32.mrb[0].mxu0
  %v653 = vpop.f32.mrb[0].mxu0
  %v654 = vadd.f32 %v566, %v653
  %v655 = vpop.f32.mrb[0].mxu0
  %656 = vdwg.mxu0
  %v657 = vmax.f32 %v627, 0.0
  %v658 = vmax.f32 %v630, 0.0
  %v659 = vmax.f32 %v635, 0.0
  %v660 = vmax.f32 %v638, 0.0
  %v661 = vmax.f32 %v643, 0.0
  %v662 = vmax.f32 %v646, 0.0
  %v663 = vmax.f32 %v651, 0.0
  %v664 = vmax.f32 %v654, 0.0
  %v665 = vld [vmem:[%s2 + $0x60] sm:$0xf]
  %v666 = vld [vmem:[%s2 + $0x64] sm:$0xf]
  %v667 = vld [vmem:[%s2 + $0x68] sm:$0xf]
  %v668 = vld [vmem:[%s2 + $0x6c] sm:$0xf]
  %v669 = vld [vmem:[%s2 + $0x70] sm:$0xf]
  %v670 = vld [vmem:[%s2 + $0x74] sm:$0xf]
  %v671 = vld [vmem:[%s2 + $0x78] sm:$0xf]
  %v672 = vld [vmem:[%s2 + $0x7c] sm:$0xf]
  %v673 = vpack.c.bf16 %v658, %v657
  %v674 = vpack.c.bf16 %v660, %v659
  %v675 = vpack.c.bf16 %v662, %v661
  %v676 = vpack.c.bf16 %v664, %v663
  %677 = vset.pattern.permute.xlu0 4
  %678 = vperm.xlu0 %677, %v512
  %v679 = vpop.permute.xlu0 %678
  %681 = vset.pattern.permute.xlu0 4
  %682 = vperm.xlu0 %681, %v513
  %v683 = vpop.permute.xlu0 %682
  %685 = vset.pattern.permute.xlu0 4
  %686 = vperm.xlu0 %685, %v514
  %v687 = vpop.permute.xlu0 %686
  %689 = vset.pattern.permute.xlu0 4
  %690 = vperm.xlu0 %689, %v515
  %v691 = vpop.permute.xlu0 %690
  %693 = vset.pattern.permute.xlu0 4
  %694 = vperm.xlu0 %693, %v516
  %v695 = vpop.permute.xlu0 %694
  %697 = vset.pattern.permute.xlu0 4
  %698 = vperm.xlu0 %697, %v517
  %v699 = vpop.permute.xlu0 %698
  %701 = vset.pattern.permute.xlu0 4
  %702 = vperm.xlu0 %701, %v518
  %v703 = vpop.permute.xlu0 %702
  %705 = vset.pattern.permute.xlu0 4
  %706 = vperm.xlu0 %705, %v519
  %v707 = vpop.permute.xlu0 %706
  %v717 = vunpack.c.l.b16 %v665
  %v718 = vunpack.c.l.b16 %v666
  %v719 = vunpack.c.l.b16 %v667
  %v720 = vunpack.c.l.b16 %v668
  %v721 = vunpack.c.l.b16 %v669
  %v722 = vunpack.c.l.b16 %v670
  %v723 = vunpack.c.l.b16 %v671
  %v724 = vunpack.c.l.b16 %v672
  %v725 = vpack.c.b16 %v718, %v717
  %v726 = vpack.c.b16 %v720, %v719
  %v727 = vpack.c.b16 %v722, %v721
  %v728 = vpack.c.b16 %v724, %v723
  %vm729 = vcmask 523264
  %v731 = vsel %vm729, %v725, 0
  %v734 = vsel %vm729, %v726, 0
  %v737 = vsel %vm729, %v727, 0
  %v740 = vsel %vm729, %v728, 0
  %742 = vmatprep.subr.bf16.mxu0 0
  %743 = vmatpush1.bf16.msra.mxu0 %v673
  %744 = vmatprep.subr.bf16.mxu0 0
  %745 = vmatpush1.bf16.msra.mxu0 %v674
  %746 = vmatprep.subr.bf16.mxu0 0
  %747 = vmatpush1.bf16.msra.mxu0 %v675
  %748 = vmatprep.subr.bf16.mxu0 0
  %749 = vmatpush1.bf16.msra.mxu0 %v676
  %750 = vmatprep.subr.bf16.mxu0 0
  %751 = vmatpush1.bf16.msra.mxu0 0
  %752 = vmatprep.subr.bf16.mxu0 0
  %753 = vmatpush1.bf16.msra.mxu0 0
  %754 = vmatprep.subr.bf16.mxu0 0
  %755 = vmatpush1.bf16.msra.mxu0 0
  %756 = vmatprep.subr.bf16.mxu0 0
  %757 = vmatpush1.bf16.msra.mxu0 0
  %758 = vmatprep.subr.bf16.mxu0 0
  %759 = vmatpush1.bf16.msra.mxu0 0
  %760 = vmatprep.subr.bf16.mxu0 0
  %761 = vmatpush1.bf16.msra.mxu0 0
  %762 = vmatprep.subr.bf16.mxu0 0
  %763 = vmatpush1.bf16.msra.mxu0 0
  %764 = vmatprep.subr.bf16.mxu0 0
  %765 = vmatpush1.bf16.msra.mxu0 0
  %766 = vmatprep.subr.bf16.mxu0 0
  %767 = vmatpush1.bf16.msra.mxu0 0
  %768 = vmatprep.subr.bf16.mxu0 0
  %769 = vmatpush1.bf16.msra.mxu0 0
  %770 = vmatprep.subr.bf16.mxu0 0
  %771 = vmatpush1.bf16.msra.mxu0 0
  %772 = vmatprep.subr.bf16.mxu0 0
  %773 = vmatpush1.bf16.msra.mxu0 0
  %774 = vmatprep.mubr.bf16.mxu0 0
  %775 = vmatmul.mubr.bf16.gmra.mrb[0].mxu0 %v731
  %v776 = vpop.f32.mrb[0].mxu0
  %v777 = vadd.f32 %v679, %v776
  %v778 = vpop.f32.mrb[0].mxu0
  %v779 = vpop.f32.mrb[0].mxu0
  %v780 = vadd.f32 %v683, %v779
  %v781 = vpop.f32.mrb[0].mxu0
  %782 = vmatprep.mubr.bf16.mxu0 0
  %783 = vmatmul.mubr.bf16.gmra.mrb[0].mxu0 %v734
  %v784 = vpop.f32.mrb[0].mxu0
  %v785 = vadd.f32 %v687, %v784
  %v786 = vpop.f32.mrb[0].mxu0
  %v787 = vpop.f32.mrb[0].mxu0
  %v788 = vadd.f32 %v691, %v787
  %v789 = vpop.f32.mrb[0].mxu0
  %790 = vmatprep.mubr.bf16.mxu0 0
  %791 = vmatmul.mubr.bf16.gmra.mrb[0].mxu0 %v737
  %v792 = vpop.f32.mrb[0].mxu0
  %v793 = vadd.f32 %v695, %v792
  %v794 = vpop.f32.mrb[0].mxu0
  %v795 = vpop.f32.mrb[0].mxu0
  %v796 = vadd.f32 %v699, %v795
  %v797 = vpop.f32.mrb[0].mxu0
  %798 = vmatprep.mubr.bf16.mxu0 0
  %799 = vmatmul.mubr.bf16.gmra.mrb[0].mxu0 %v740
  %v800 = vpop.f32.mrb[0].mxu0
  %v801 = vadd.f32 %v703, %v800
  %v802 = vpop.f32.mrb[0].mxu0
  %v803 = vpop.f32.mrb[0].mxu0
  %v804 = vadd.f32 %v707, %v803
  %v805 = vpop.f32.mrb[0].mxu0
  %806 = vdwg.mxu0
  %v807 = vmax.f32 %v777, 0.0
  %v808 = vmax.f32 %v780, 0.0
  %v809 = vmax.f32 %v785, 0.0
  %v810 = vmax.f32 %v788, 0.0
  %v811 = vmax.f32 %v793, 0.0
  %v812 = vmax.f32 %v796, 0.0
  %v813 = vmax.f32 %v801, 0.0
  %v814 = vmax.f32 %v804, 0.0
  %v815 = vld [vmem:[%s2 + $0x80] sm:$0xf]
  %v816 = vld [vmem:[%s2 + $0x84] sm:$0xf]
  %v817 = vld [vmem:[%s2 + $0x88] sm:$0xf]
  %v818 = vld [vmem:[%s2 + $0x8c] sm:$0xf]
  %v819 = vld [vmem:[%s2 + $0x90] sm:$0xf]
  %v820 = vld [vmem:[%s2 + $0x94] sm:$0xf]
  %v821 = vld [vmem:[%s2 + $0x98] sm:$0xf]
  %v822 = vld [vmem:[%s2 + $0x9c] sm:$0xf]
  %v823 = vpack.c.bf16 %v808, %v807
  %v824 = vpack.c.bf16 %v810, %v809
  %v825 = vpack.c.bf16 %v812, %v811
  %v826 = vpack.c.bf16 %v814, %v813
  %827 = vset.pattern.permute.xlu0 5
  %828 = vperm.xlu0 %827, %v512
  %v829 = vpop.permute.xlu0 %828
  %831 = vset.pattern.permute.xlu0 5
  %832 = vperm.xlu0 %831, %v513
  %v833 = vpop.permute.xlu0 %832
  %835 = vset.pattern.permute.xlu0 5
  %836 = vperm.xlu0 %835, %v514
  %v837 = vpop.permute.xlu0 %836
  %839 = vset.pattern.permute.xlu0 5
  %840 = vperm.xlu0 %839, %v515
  %v841 = vpop.permute.xlu0 %840
  %843 = vset.pattern.permute.xlu0 5
  %844 = vperm.xlu0 %843, %v516
  %v845 = vpop.permute.xlu0 %844
  %847 = vset.pattern.permute.xlu0 5
  %848 = vperm.xlu0 %847, %v517
  %v849 = vpop.permute.xlu0 %848
  %851 = vset.pattern.permute.xlu0 5
  %852 = vperm.xlu0 %851, %v518
  %v853 = vpop.permute.xlu0 %852
  %855 = vset.pattern.permute.xlu0 5
  %856 = vperm.xlu0 %855, %v519
  %v857 = vpop.permute.xlu0 %856
  %v867 = vunpack.c.l.b16 %v815
  %v868 = vunpack.c.l.b16 %v816
  %v869 = vunpack.c.l.b16 %v817
  %v870 = vunpack.c.l.b16 %v818
  %v871 = vunpack.c.l.b16 %v819
  %v872 = vunpack.c.l.b16 %v820
  %v873 = vunpack.c.l.b16 %v821
  %v874 = vunpack.c.l.b16 %v822
  %v875 = vpack.c.b16 %v868, %v867
  %v876 = vpack.c.b16 %v870, %v869
  %v877 = vpack.c.b16 %v872, %v871
  %v878 = vpack.c.b16 %v874, %v873
  %v880 = vsel %vm729, %v875, 0
  %v883 = vsel %vm729, %v876, 0
  %v886 = vsel %vm729, %v877, 0
  %v889 = vsel %vm729, %v878, 0
  %891 = vmatprep.subr.bf16.mxu0 0
  %892 = vmatpush1.bf16.msra.mxu0 %v823
  %893 = vmatprep.subr.bf16.mxu0 0
  %894 = vmatpush1.bf16.msra.mxu0 %v824
  %895 = vmatprep.subr.bf16.mxu0 0
  %896 = vmatpush1.bf16.msra.mxu0 %v825
  %897 = vmatprep.subr.bf16.mxu0 0
  %898 = vmatpush1.bf16.msra.mxu0 %v826
  %899 = vmatprep.subr.bf16.mxu0 0
  %900 = vmatpush1.bf16.msra.mxu0 0
  %901 = vmatprep.subr.bf16.mxu0 0
  %902 = vmatpush1.bf16.msra.mxu0 0
  %903 = vmatprep.subr.bf16.mxu0 0
  %904 = vmatpush1.bf16.msra.mxu0 0
  %905 = vmatprep.subr.bf16.mxu0 0
  %906 = vmatpush1.bf16.msra.mxu0 0
  %907 = vmatprep.subr.bf16.mxu0 0
  %908 = vmatpush1.bf16.msra.mxu0 0
  %909 = vmatprep.subr.bf16.mxu0 0
  %910 = vmatpush1.bf16.msra.mxu0 0
  %911 = vmatprep.subr.bf16.mxu0 0
  %912 = vmatpush1.bf16.msra.mxu0 0
  %913 = vmatprep.subr.bf16.mxu0 0
  %914 = vmatpush1.bf16.msra.mxu0 0
  %915 = vmatprep.subr.bf16.mxu0 0
  %916 = vmatpush1.bf16.msra.mxu0 0
  %917 = vmatprep.subr.bf16.mxu0 0
  %918 = vmatpush1.bf16.msra.mxu0 0
  %919 = vmatprep.subr.bf16.mxu0 0
  %920 = vmatpush1.bf16.msra.mxu0 0
  %921 = vmatprep.subr.bf16.mxu0 0
  %922 = vmatpush1.bf16.msra.mxu0 0
  %923 = vmatprep.mubr.bf16.mxu0 0
  %924 = vmatmul.mubr.bf16.gmra.mrb[0].mxu0 %v880
  %v925 = vpop.f32.mrb[0].mxu0
  %v926 = vadd.f32 %v829, %v925
  %v927 = vpop.f32.mrb[0].mxu0
  %v928 = vpop.f32.mrb[0].mxu0
  %v929 = vadd.f32 %v833, %v928
  %v930 = vpop.f32.mrb[0].mxu0
  %931 = vmatprep.mubr.bf16.mxu0 0
  %932 = vmatmul.mubr.bf16.gmra.mrb[0].mxu0 %v883
  %v933 = vpop.f32.mrb[0].mxu0
  %v934 = vadd.f32 %v837, %v933
  %v935 = vpop.f32.mrb[0].mxu0
  %v936 = vpop.f32.mrb[0].mxu0
  %v937 = vadd.f32 %v841, %v936
  %v938 = vpop.f32.mrb[0].mxu0
  %939 = vmatprep.mubr.bf16.mxu0 0
  %940 = vmatmul.mubr.bf16.gmra.mrb[0].mxu0 %v886
  %v941 = vpop.f32.mrb[0].mxu0
  %v942 = vadd.f32 %v845, %v941
  %v943 = vpop.f32.mrb[0].mxu0
  %v944 = vpop.f32.mrb[0].mxu0
  %v945 = vadd.f32 %v849, %v944
  %v946 = vpop.f32.mrb[0].mxu0
  %947 = vmatprep.mubr.bf16.mxu0 0
  %948 = vmatmul.mubr.bf16.gmra.mrb[0].mxu0 %v889
  %v949 = vpop.f32.mrb[0].mxu0
  %v950 = vadd.f32 %v853, %v949
  %v951 = vpop.f32.mrb[0].mxu0
  %v952 = vpop.f32.mrb[0].mxu0
  %v953 = vadd.f32 %v857, %v952
  %v954 = vpop.f32.mrb[0].mxu0
  %955 = vdwg.mxu0
  %v956 = vmax.f32 %v926, 0.0
  %v957 = vmax.f32 %v929, 0.0
  %v958 = vmax.f32 %v934, 0.0
  %v959 = vmax.f32 %v937, 0.0
  %v960 = vmax.f32 %v942, 0.0
  %v961 = vmax.f32 %v945, 0.0
  %v962 = vmax.f32 %v950, 0.0
  %v963 = vmax.f32 %v953, 0.0
  %v964 = vld [vmem:[%s2 + $0xa0] sm:$0xf]
  %v965 = vld [vmem:[%s2 + $0xa4] sm:$0xf]
  %v966 = vld [vmem:[%s2 + $0xa8] sm:$0xf]
  %v967 = vld [vmem:[%s2 + $0xac] sm:$0xf]
  %v968 = vld [vmem:[%s1] sm:$0xff]
  %v969 = vld [vmem:[%s1 + $0x8] sm:$0xff]
  %v970 = vld [vmem:[%s1 + $0x10] sm:$0xff]
  %v971 = vld [vmem:[%s1 + $0x18] sm:$0xff]
  %v972 = vpack.c.bf16 %v957, %v956
  %v973 = vpack.c.bf16 %v959, %v958
  %v974 = vpack.c.bf16 %v961, %v960
  %v975 = vpack.c.bf16 %v963, %v962
  %977 = vset.pattern.permute.xlu0 6
  %978 = vperm.xlu0 %977, %v968
  %v979 = vpop.permute.xlu0 %978
  %982 = vset.pattern.permute.xlu0 6
  %983 = vperm.xlu0 %982, %v969
  %v984 = vpop.permute.xlu0 %983
  %987 = vset.pattern.permute.xlu0 6
  %988 = vperm.xlu0 %987, %v970
  %v989 = vpop.permute.xlu0 %988
  %992 = vset.pattern.permute.xlu0 6
  %993 = vperm.xlu0 %992, %v971
  %v994 = vpop.permute.xlu0 %993
  %v1000 = vunpack.c.l.b16 %v964
  %v1001 = vunpack.c.l.b16 %v965
  %v1002 = vunpack.c.l.b16 %v966
  %v1003 = vunpack.c.l.b16 %v967
  %v1004 = vpack.c.b16 %v1001, %v1000
  %v1005 = vpack.c.b16 %v1003, %v1002
  %v1007 = vsel %vm729, %v1004, 0
  %v1010 = vsel %vm729, %v1005, 0
  %1012 = vmatprep.subr.bf16.mxu0 0
  %1013 = vmatpush1.bf16.msra.mxu0 %v972
  %1014 = vmatprep.subr.bf16.mxu0 0
  %1015 = vmatpush1.bf16.msra.mxu0 %v973
  %1016 = vmatprep.subr.bf16.mxu0 0
  %1017 = vmatpush1.bf16.msra.mxu0 %v974
  %1018 = vmatprep.subr.bf16.mxu0 0
  %1019 = vmatpush1.bf16.msra.mxu0 %v975
  %1020 = vmatprep.subr.bf16.mxu0 0
  %1021 = vmatpush1.bf16.msra.mxu0 0
  %1022 = vmatprep.subr.bf16.mxu0 0
  %1023 = vmatpush1.bf16.msra.mxu0 0
  %1024 = vmatprep.subr.bf16.mxu0 0
  %1025 = vmatpush1.bf16.msra.mxu0 0
  %1026 = vmatprep.subr.bf16.mxu0 0
  %1027 = vmatpush1.bf16.msra.mxu0 0
  %1028 = vmatprep.subr.bf16.mxu0 0
  %1029 = vmatpush1.bf16.msra.mxu0 0
  %1030 = vmatprep.subr.bf16.mxu0 0
  %1031 = vmatpush1.bf16.msra.mxu0 0
  %1032 = vmatprep.subr.bf16.mxu0 0
  %1033 = vmatpush1.bf16.msra.mxu0 0
  %1034 = vmatprep.subr.bf16.mxu0 0
  %1035 = vmatpush1.bf16.msra.mxu0 0
  %1036 = vmatprep.subr.bf16.mxu0 0
  %1037 = vmatpush1.bf16.msra.mxu0 0
  %1038 = vmatprep.subr.bf16.mxu0 0
  %1039 = vmatpush1.bf16.msra.mxu0 0
  %1040 = vmatprep.subr.bf16.mxu0 0
  %1041 = vmatpush1.bf16.msra.mxu0 0
  %1042 = vmatprep.subr.bf16.mxu0 0
  %1043 = vmatpush1.bf16.msra.mxu0 0
  %1044 = vmatprep.mubr.bf16.mxu0 0
  %1045 = vmatmul.mubr.bf16.gmra.mrb[0].mxu0 %v1007
  %v1046 = vpop.f32.mrb[0].mxu0
  %v1047 = vadd.f32 %v979, %v1046
  %v1048 = vpop.f32.mrb[0].mxu0
  %v1049 = vpop.f32.mrb[0].mxu0
  %v1050 = vadd.f32 %v984, %v1049
  %v1051 = vpop.f32.mrb[0].mxu0
  %1052 = vmatprep.mubr.bf16.mxu0 0
  %1053 = vmatmul.mubr.bf16.gmra.mrb[0].mxu0 %v1010
  %v1054 = vpop.f32.mrb[0].mxu0
  %v1055 = vadd.f32 %v989, %v1054
  %v1056 = vpop.f32.mrb[0].mxu0
  %v1057 = vpop.f32.mrb[0].mxu0
  %v1058 = vadd.f32 %v994, %v1057
  %v1059 = vpop.f32.mrb[0].mxu0
  %1060 = vdwg.mxu0
  %v1061 = vmax.f32 %v1047, 0.0
  %v1062 = vmax.f32 %v1050, 0.0
  %v1063 = vmax.f32 %v1055, 0.0
  %v1064 = vmax.f32 %v1058, 0.0
  %v1065 = vld [vmem:[%s2 + $0xb0] sm:$0xf]
  %v1066 = vld [vmem:[%s2 + $0xb4] sm:$0xf]
  %v1067 = vld [vmem:[%s2 + $0xb8] sm:$0xf]
  %v1068 = vld [vmem:[%s2 + $0xbc] sm:$0xf]
  %v1069 = vpack.c.bf16 %v1062, %v1061
  %v1070 = vpack.c.bf16 %v1064, %v1063
  %1071 = vset.pattern.permute.xlu0 7
  %1072 = vperm.xlu0 %1071, %v968
  %v1073 = vpop.permute.xlu0 %1072
  %1075 = vset.pattern.permute.xlu0 7
  %1076 = vperm.xlu0 %1075, %v969
  %v1077 = vpop.permute.xlu0 %1076
  %1079 = vset.pattern.permute.xlu0 7
  %1080 = vperm.xlu0 %1079, %v970
  %v1081 = vpop.permute.xlu0 %1080
  %1083 = vset.pattern.permute.xlu0 7
  %1084 = vperm.xlu0 %1083, %v971
  %v1085 = vpop.permute.xlu0 %1084
  %v1091 = vunpack.c.l.b16 %v1065
  %v1092 = vunpack.c.l.b16 %v1066
  %v1093 = vunpack.c.l.b16 %v1067
  %v1094 = vunpack.c.l.b16 %v1068
  %v1095 = vpack.c.b16 %v1092, %v1091
  %v1096 = vpack.c.b16 %v1094, %v1093
  %vm1097 = vcmask 261120
  %v1099 = vsel %vm1097, %v1095, 0
  %v1102 = vsel %vm1097, %v1096, 0
  %1104 = vmatprep.subr.bf16.mxu0 0
  %1105 = vmatpush1.bf16.msra.mxu0 %v1069
  %1106 = vmatprep.subr.bf16.mxu0 0
  %1107 = vmatpush1.bf16.msra.mxu0 %v1070
  %1108 = vmatprep.subr.bf16.mxu0 0
  %1109 = vmatpush1.bf16.msra.mxu0 0
  %1110 = vmatprep.subr.bf16.mxu0 0
  %1111 = vmatpush1.bf16.msra.mxu0 0
  %1112 = vmatprep.subr.bf16.mxu0 0
  %1113 = vmatpush1.bf16.msra.mxu0 0
  %1114 = vmatprep.subr.bf16.mxu0 0
  %1115 = vmatpush1.bf16.msra.mxu0 0
  %1116 = vmatprep.subr.bf16.mxu0 0
  %1117 = vmatpush1.bf16.msra.mxu0 0
  %1118 = vmatprep.subr.bf16.mxu0 0
  %1119 = vmatpush1.bf16.msra.mxu0 0
  %1120 = vmatprep.subr.bf16.mxu0 0
  %1121 = vmatpush1.bf16.msra.mxu0 0
  %1122 = vmatprep.subr.bf16.mxu0 0
  %1123 = vmatpush1.bf16.msra.mxu0 0
  %1124 = vmatprep.subr.bf16.mxu0 0
  %1125 = vmatpush1.bf16.msra.mxu0 0
  %1126 = vmatprep.subr.bf16.mxu0 0
  %1127 = vmatpush1.bf16.msra.mxu0 0
  %1128 = vmatprep.subr.bf16.mxu0 0
  %1129 = vmatpush1.bf16.msra.mxu0 0
  %1130 = vmatprep.subr.bf16.mxu0 0
  %1131 = vmatpush1.bf16.msra.mxu0 0
  %1132 = vmatprep.subr.bf16.mxu0 0
  %1133 = vmatpush1.bf16.msra.mxu0 0
  %1134 = vmatprep.subr.bf16.mxu0 0
  %1135 = vmatpush1.bf16.msra.mxu0 0
  %1136 = vmatprep.mubr.bf16.mxu0 0
  %1137 = vmatmul.mubr.bf16.gmra.mrb[0].mxu0 %v1099
  %v1138 = vpop.f32.mrb[0].mxu0
  %v1139 = vadd.f32 %v1073, %v1138
  %v1140 = vpop.f32.mrb[0].mxu0
  %v1141 = vpop.f32.mrb[0].mxu0
  %v1142 = vadd.f32 %v1077, %v1141
  %v1143 = vpop.f32.mrb[0].mxu0
  %1144 = vmatprep.mubr.bf16.mxu0 0
  %1145 = vmatmul.mubr.bf16.gmra.mrb[0].mxu0 %v1102
  %v1146 = vpop.f32.mrb[0].mxu0
  %v1147 = vadd.f32 %v1081, %v1146
  %v1148 = vpop.f32.mrb[0].mxu0
  %v1149 = vpop.f32.mrb[0].mxu0
  %v1150 = vadd.f32 %v1085, %v1149
  %v1151 = vpop.f32.mrb[0].mxu0
  %1152 = vdwg.mxu0
  %v1153 = vmax.f32 %v1139, 0.0
  %v1154 = vmax.f32 %v1142, 0.0
  %v1155 = vmax.f32 %v1147, 0.0
  %v1156 = vmax.f32 %v1150, 0.0
  %v1157 = vld [vmem:[%s2 + $0xc0] sm:$0xf]
  %v1158 = vld [vmem:[%s2 + $0xc4] sm:$0xf]
  %v1159 = vld [vmem:[%s1] sm:$0xff]
  %v1160 = vld [vmem:[%s1 + $0x8] sm:$0xff]
  %v1161 = vpack.c.bf16 %v1154, %v1153
  %v1162 = vpack.c.bf16 %v1156, %v1155
  %1164 = vset.pattern.permute.xlu0 8
  %1165 = vperm.xlu0 %1164, %v1159
  %v1166 = vpop.permute.xlu0 %1165
  %1169 = vset.pattern.permute.xlu0 8
  %1170 = vperm.xlu0 %1169, %v1160
  %v1171 = vpop.permute.xlu0 %1170
  %v1175 = vunpack.c.l.b16 %v1157
  %v1176 = vunpack.c.l.b16 %v1158
  %v1177 = vpack.c.b16 %v1176, %v1175
  %v1179 = vsel %vm1097, %v1177, 0
  %1181 = vmatprep.subr.bf16.mxu0 0
  %1182 = vmatpush1.bf16.msra.mxu0 %v1161
  %1183 = vmatprep.subr.bf16.mxu0 0
  %1184 = vmatpush1.bf16.msra.mxu0 %v1162
  %1185 = vmatprep.subr.bf16.mxu0 0
  %1186 = vmatpush1.bf16.msra.mxu0 0
  %1187 = vmatprep.subr.bf16.mxu0 0
  %1188 = vmatpush1.bf16.msra.mxu0 0
  %1189 = vmatprep.subr.bf16.mxu0 0
  %1190 = vmatpush1.bf16.msra.mxu0 0
  %1191 = vmatprep.subr.bf16.mxu0 0
  %1192 = vmatpush1.bf16.msra.mxu0 0
  %1193 = vmatprep.subr.bf16.mxu0 0
  %1194 = vmatpush1.bf16.msra.mxu0 0
  %1195 = vmatprep.subr.bf16.mxu0 0
  %1196 = vmatpush1.bf16.msra.mxu0 0
  %1197 = vmatprep.subr.bf16.mxu0 0
  %1198 = vmatpush1.bf16.msra.mxu0 0
  %1199 = vmatprep.subr.bf16.mxu0 0
  %1200 = vmatpush1.bf16.msra.mxu0 0
  %1201 = vmatprep.subr.bf16.mxu0 0
  %1202 = vmatpush1.bf16.msra.mxu0 0
  %1203 = vmatprep.subr.bf16.mxu0 0
  %1204 = vmatpush1.bf16.msra.mxu0 0
  %1205 = vmatprep.subr.bf16.mxu0 0
  %1206 = vmatpush1.bf16.msra.mxu0 0
  %1207 = vmatprep.subr.bf16.mxu0 0
  %1208 = vmatpush1.bf16.msra.mxu0 0
  %1209 = vmatprep.subr.bf16.mxu0 0
  %1210 = vmatpush1.bf16.msra.mxu0 0
  %1211 = vmatprep.subr.bf16.mxu0 0
  %1212 = vmatpush1.bf16.msra.mxu0 0
  %1213 = vmatprep.mubr.bf16.mxu0 0
  %1214 = vmatmul.mubr.bf16.gmra.mrb[0].mxu0 %v1179
  %v1215 = vpop.f32.mrb[0].mxu0
  %v1216 = vadd.f32 %v1166, %v1215
  %v1217 = vpop.f32.mrb[0].mxu0
  %v1218 = vpop.f32.mrb[0].mxu0
  %v1219 = vadd.f32 %v1171, %v1218
  %v1220 = vpop.f32.mrb[0].mxu0
  %1221 = vdwg.mxu0
  %v1222 = vmax.f32 %v1216, 0.0
  %v1223 = vmax.f32 %v1219, 0.0
  %v1224 = vld [vmem:[%s2 + $0xc8] sm:$0xf]
  %v1225 = vld [vmem:[%s2 + $0xcc] sm:$0xf]
  %v1226 = vpack.c.bf16 %v1223, %v1222
  %1227 = vset.pattern.permute.xlu0 9
  %1228 = vperm.xlu0 %1227, %v1159
  %v1229 = vpop.permute.xlu0 %1228
  %1231 = vset.pattern.permute.xlu0 9
  %1232 = vperm.xlu0 %1231, %v1160
  %v1233 = vpop.permute.xlu0 %1232
  %v1237 = vunpack.c.l.b16 %v1224
  %v1238 = vunpack.c.l.b16 %v1225
  %v1239 = vpack.c.b16 %v1238, %v1237
  %vm1240 = vcmask 130048
  %v1242 = vsel %vm1240, %v1239, 0
  %1244 = vmatprep.subr.bf16.mxu0 0
  %1245 = vmatpush1.bf16.msra.mxu0 %v1226
  %1246 = vmatprep.subr.bf16.mxu0 0
  %1247 = vmatpush1.bf16.msra.mxu0 0
  %1248 = vmatprep.subr.bf16.mxu0 0
  %1249 = vmatpush1.bf16.msra.mxu0 0
  %1250 = vmatprep.subr.bf16.mxu0 0
  %1251 = vmatpush1.bf16.msra.mxu0 0
  %1252 = vmatprep.subr.bf16.mxu0 0
  %1253 = vmatpush1.bf16.msra.mxu0 0
  %1254 = vmatprep.subr.bf16.mxu0 0
  %1255 = vmatpush1.bf16.msra.mxu0 0
  %1256 = vmatprep.subr.bf16.mxu0 0
  %1257 = vmatpush1.bf16.msra.mxu0 0
  %1258 = vmatprep.subr.bf16.mxu0 0
  %1259 = vmatpush1.bf16.msra.mxu0 0
  %1260 = vmatprep.subr.bf16.mxu0 0
  %1261 = vmatpush1.bf16.msra.mxu0 0
  %1262 = vmatprep.subr.bf16.mxu0 0
  %1263 = vmatpush1.bf16.msra.mxu0 0
  %1264 = vmatprep.subr.bf16.mxu0 0
  %1265 = vmatpush1.bf16.msra.mxu0 0
  %1266 = vmatprep.subr.bf16.mxu0 0
  %1267 = vmatpush1.bf16.msra.mxu0 0
  %1268 = vmatprep.subr.bf16.mxu0 0
  %1269 = vmatpush1.bf16.msra.mxu0 0
  %1270 = vmatprep.subr.bf16.mxu0 0
  %1271 = vmatpush1.bf16.msra.mxu0 0
  %1272 = vmatprep.subr.bf16.mxu0 0
  %1273 = vmatpush1.bf16.msra.mxu0 0
  %1274 = vmatprep.subr.bf16.mxu0 0
  %1275 = vmatpush1.bf16.msra.mxu0 0
  %1276 = vmatprep.mubr.bf16.mxu0 0
  %1277 = vmatmul.mubr.bf16.gmra.mrb[0].mxu0 %v1242
  %v1278 = vpop.f32.mrb[0].mxu0
  %v1279 = vadd.f32 %v1229, %v1278
  %v1280 = vpop.f32.mrb[0].mxu0
  %v1281 = vpop.f32.mrb[0].mxu0
  %v1282 = vadd.f32 %v1233, %v1281
  %v1283 = vpop.f32.mrb[0].mxu0
  %1284 = vdwg.mxu0
  %v1285 = vmul.f32 %v1279, %v1279
  %v1286 = vmul.f32 %v1282, %v1282
  %v1287 = vadd.f32 %v1285, %v1286
  %v1288 = vrot.slane %v1287, 4
  %v1289 = vadd.f32 %v1287, %v1288
  %v1290 = vrot.slane %v1289, 2
  %v1291 = vadd.f32 %v1289, %v1290
  %v1292 = vrot.slane %v1291, 1
  %v1293 = vadd.f32 %v1291, %v1292
  %v1294 = vmax.f32 %v1293, 1e-12
  %v1295 = vrsqrt.pop %v1294
  %v1296 = vmul.f32 %v1279, %v1295
  %v1297 = vmul.f32 %v1282, %v1295
  %1298 = vst [vmem:[%s3] sm:$0xff] %v1296
  %1299 = vst [vmem:[%s3 + $0x8] sm:$0xff] %v1297
  // Predicated region
  $region14: #{embedding_net_l2.1} parent=0 // pred_check
    _
  $region15: #{embedding_net_l2.1} parent=0 // pred_check_branch
    %1301 = sbr.rel (0) target = $region17
  $region16: #{embedding_net_l2.1} parent=0 // pred_region
    _
  $region17: #{embedding_net_l2.1} parent=0 // pred_fallthru
    _
  // Predicated region
  $region18: #{embedding_net_l2.1} parent=0 // pred_check
    _
  $region19: #{embedding_net_l2.1} parent=0 // pred_check_branch
    %1303 = sbr.rel (0) target = $region21
  $region20: #{embedding_net_l2.1} parent=0 // pred_region
    _
  $region21: #{embedding_net_l2.1} parent=0 // pred_fallthru
    _

</llo_original>
